<compile_context>
chip_gen: v5e
topology: v5e:2x2
jax: 0.10.0
libtpu: 0.0.40
codegen_flags: <defaults>
</compile_context>

<pallas_src>
import jax
import jax.numpy as jnp
from jax.experimental import pallas as pl
from jax.experimental.pallas import tpu as pltpu


def msgcn_kernel(x_ref, wf_ref, shift_ref, o_ref):
    """One (sample-block, lane-tile) step of the fused MSGCN forward.

    x_ref:     (Nb, C_in,  TILE)  bf16 input slab (native NCHW, T*V flattened)
    wf_ref:    (C_out, C_in)      bf16 fused weights  W_main + scale * W_res
    shift_ref: (C_out, 1)         f32 folded shift    beta + (bias - mean)*scale
    o_ref:     (Nb, C_out, TILE)  output slab
    """
    w = wf_ref[...]
    s = shift_ref[...]
    for b in range(x_ref.shape[0]):                 # static, tiny (Nb samples)
        y = jnp.dot(w, x_ref[b], preferred_element_type=jnp.float32)
        o_ref[b] = jnp.maximum(y + s, 0.0).astype(o_ref.dtype)


def _vmem_capacity_bytes():
    """Per-TensorCore VMEM capacity; conservative fallback = v7x (64 MiB)."""
    try:
        info = pltpu.get_tpu_info()
        cap = int(getattr(info, "vmem_capacity_bytes", 0) or 0)
        if cap > 0:
            return cap
    except Exception:
        pass
    return 64 * 1024 * 1024


def _largest_tile_dividing(l_pad, tile_max):
    """Largest multiple of 128 that divides l_pad and is <= tile_max."""
    k = l_pad // 128
    best = 1
    for d in range(1, k + 1):
        if k % d == 0 and d * 128 <= tile_max:
            best = d
    return best * 128


def _plan_tiles(n, c_in, c_out, l_pad, in_bytes, out_bytes, budget_bytes):
    """Pick (samples-per-step, lane tile, #lane tiles) from the VMEM budget."""
    # Double-buffered input + output blocks per lane (resident weights are
    # negligible against the budget).
    per_lane = 2 * (c_in * in_bytes + c_out * out_bytes)
    tile_max = max(128, int(budget_bytes // per_lane))
    # Keep >= 2 lane tiles when N == 1 so the v7x megacore sees >= 2 steps.
    if n == 1:
        tile_max = min(tile_max, max(128, l_pad // 2))
    tile = _largest_tile_dividing(l_pad, tile_max)
    num_lane_tiles = l_pad // tile

    # If a whole sample fits one tile, batch samples per step (amortizes the
    # ~0.35 us per-grid-step overhead) while keeping >= 2 batch steps.
    nb = 1
    if num_lane_tiles == 1 and n > 1:
        cap = max(1, min(int(budget_bytes // (tile * per_lane)), n // 2))
        nb = max(d for d in range(1, cap + 1) if n % d == 0)
    return nb, tile, num_lane_tiles


def msgcn_forward(x, w_main, w_res, b_res, bn_gamma, bn_beta, bn_mean, bn_var,
                  *, eps=1e-5, out_dtype=jnp.float32):
    """x: (N, C_in, T, V) float32 -> (N, C_out, T, V) out_dtype."""
    N, C_in, T, V = x.shape
    C_out = w_main.shape[0]
    L = T * V
    L_pad = ((L + 127) // 128) * 128

    # Fold residual-branch BatchNorm2d (eval) + conv bias, then fuse both
    # pointwise branches into one weight matrix:
    #   relu(Wm@x + scale*(Wr@x + b - mean) + beta)
    #     = relu((Wm + scale[:,None]*Wr) @ x + shift)
    inv_std = 1.0 / jnp.sqrt(bn_var.astype(jnp.float32) + eps)
    scale = bn_gamma.astype(jnp.float32) * inv_std                    # (C_out,)
    shift = (bn_beta.astype(jnp.float32)
             + (b_res.astype(jnp.float32) - bn_mean.astype(jnp.float32)) * scale)
    w_fused = (w_main.astype(jnp.float32)
               + scale[:, None] * w_res.astype(jnp.float32))

    # Bandwidth-bound kernel: bf16 inputs/weights (f32 MXU accumulation),
    # f32 shift + ReLU.  Native NCHW layout, free reshape, no transposes.
    x3 = x.reshape(N, C_in, L).astype(jnp.bfloat16)
    if L_pad != L:
        # Zero-pad lanes so every block is full and stores are lane-dense.
        x3 = jnp.pad(x3, ((0, 0), (0, 0), (0, L_pad - L)))
    w_fused = w_fused.astype(jnp.bfloat16)
    shift = shift.reshape(C_out, 1)

    vmem_cap = _vmem_capacity_bytes()
    budget = vmem_cap // 4                      # headroom for weights/pipeline
    nb, tile, num_lane_tiles = _plan_tiles(
        N, C_in, C_out, L_pad,
        in_bytes=2, out_bytes=jnp.dtype(out_dtype).itemsize,
        budget_bytes=budget)
    grid = (N // nb, num_lane_tiles)

    out3 = pl.pallas_call(
        msgcn_kernel,
        out_shape=jax.ShapeDtypeStruct((N, C_out, L_pad), out_dtype),
        grid_spec=pltpu.PrefetchScalarGridSpec(
            num_scalar_prefetch=0,
            grid=grid,
            in_specs=[
                # (Nb, C_in, tile) slab of the native (N, C_in, T*V) input
                pl.BlockSpec((nb, C_in, tile), lambda b, i: (b, 0, i)),
                # fused weights, resident across the whole grid
                pl.BlockSpec((C_out, C_in), lambda b, i: (0, 0)),
                # folded per-channel shift, resident
                pl.BlockSpec((C_out, 1), lambda b, i: (0, 0)),
            ],
            out_specs=pl.BlockSpec((nb, C_out, tile), lambda b, i: (b, 0, i)),
        ),
        compiler_params=pltpu.CompilerParams(
            dimension_semantics=("parallel", "parallel"),
            vmem_limit_bytes=int(vmem_cap // 2),
        ),
    )(x3, w_fused, shift)

    if L_pad != L:
        out3 = out3[:, :, :L]
    return out3.reshape(N, C_out, T, V)


def _reference(x, w_main, w_res, b_res, g, b, m, v, eps=1e-5):
    """Pure-JAX reference mirroring the kernel's fusion and bf16 I/O casts."""
    N, C_in, T, V = x.shape
    C_out = w_main.shape[0]
    inv_std = 1.0 / jnp.sqrt(v + eps)
    scale = g * inv_std
    shift = b + (b_res - m) * scale
    w_fused = (w_main + scale[:, None] * w_res)
    w_bf = w_fused.astype(jnp.bfloat16).astype(jnp.float32)
    x_bf = x.reshape(N, C_in, T * V).astype(jnp.bfloat16).astype(jnp.float32)
    y = jnp.einsum("oc,ncl->nol", w_bf, x_bf) + shift[None, :, None]
    return jnp.maximum(y, 0.0).reshape(N, C_out, T, V)


if __name__ == "__main__":
    # Small shapes consistent with the module: skeleton tensor (N, C, T, V).
    N, C_in, C_out, T, V = 2, 4, 8, 16, 16   # Frames=T=16, joints V=16

    key = jax.random.PRNGKey(0)
    kx, km, kr = jax.random.split(key, 3)

    x = jax.random.normal(kx, (N, C_in, T, V), dtype=jnp.float32)

    # Deterministic parameter init (kaiming-normal, fan_out mode, 1x1 kernels).
    std = (2.0 / C_out) ** 0.5
    w_main = std * jax.random.normal(km, (C_out, C_in), dtype=jnp.float32)
    w_res = std * jax.random.normal(kr, (C_out, C_in), dtype=jnp.float32)
    b_res = jnp.zeros((C_out,), jnp.float32)            # conv_init: bias = 0

    bn_gamma = jnp.ones((C_out,), jnp.float32)           # bn_init(bn, 1)
    bn_beta = jnp.zeros((C_out,), jnp.float32)
    bn_mean = jnp.zeros((C_out,), jnp.float32)           # fresh running stats
    bn_var = jnp.ones((C_out,), jnp.float32)

    out = msgcn_forward(x, w_main, w_res, b_res,
                        bn_gamma, bn_beta, bn_mean, bn_var)
    out = jax.block_until_ready(out)

    ref = _reference(x, w_main, w_res, b_res,
                     bn_gamma, bn_beta, bn_mean, bn_var)
    assert out.shape == (N, C_out, T, V)
    assert out.dtype == jnp.float32
    assert jnp.max(jnp.abs(out - ref)) < 1e-3

    print("KERNEL_OK")
</pallas_src>

<mosaic_0001>
module attributes {stable_mosaic.version = 11 : i64} {
  func.func @msgcn_kernel(%arg0: i32, %arg1: i32, %arg2: memref<1x4x256xbf16, #tpu.memory_space<vmem>>, %arg3: memref<8x4xbf16, #tpu.memory_space<vmem>>, %arg4: memref<8x1xf32, #tpu.memory_space<vmem>>, %arg5: memref<1x8x256xf32, #tpu.memory_space<vmem>>) attributes {dimension_semantics = [#tpu.dimension_semantics<parallel>, #tpu.dimension_semantics<parallel>], iteration_bounds = array<i64: 2, 1>, scalar_prefetch = 0 : i64, scratch_operands = 0 : i64, tpu.core_type = #tpu.core_type<tc>, window_params = [{transform_indices = @transform_0, window_bounds = array<i64: 1, 4, 256>}, {pipeline_mode = #tpu.pipeline_mode<synchronous>, transform_indices = @transform_1, window_bounds = array<i64: 8, 4>}, {pipeline_mode = #tpu.pipeline_mode<synchronous>, transform_indices = @transform_2, window_bounds = array<i64: 8, 1>}, {transform_indices = @transform_3, window_bounds = array<i64: 1, 8, 256>}]} {
    %c0 = arith.constant 0 : index
    %c0_0 = arith.constant 0 : index
    %0 = vector.load %arg3[%c0, %c0_0] : memref<8x4xbf16, #tpu.memory_space<vmem>>, vector<8x4xbf16>
    %c0_1 = arith.constant 0 : index
    %c0_2 = arith.constant 0 : index
    %1 = vector.load %arg4[%c0_1, %c0_2] : memref<8x1xf32, #tpu.memory_space<vmem>>, vector<8x1xf32>
    %c0_3 = arith.constant 0 : index
    %c0_4 = arith.constant 0 : index
    %c0_5 = arith.constant 0 : index
    %2 = vector.load %arg2[%c0_3, %c0_4, %c0_5] : memref<1x4x256xbf16, #tpu.memory_space<vmem>>, vector<1x4x256xbf16>
    %3 = vector.shape_cast %2 : vector<1x4x256xbf16> to vector<4x256xbf16>
    %cst = arith.constant dense<0.000000e+00> : vector<8x256xf32>
    %4 = tpu.matmul %0, %3, %cst {dimension_numbers = #tpu.dot_dimension_numbers<[1], [0], [0], [1], [0, 0, 1, 1], [], []>} : vector<8x4xbf16>, vector<4x256xbf16>, vector<8x256xf32> -> vector<8x256xf32>
    %5 = vector.broadcast %1 : vector<8x1xf32> to vector<8x256xf32>
    %6 = arith.addf %4, %5 : vector<8x256xf32>
    %cst_6 = arith.constant 0.000000e+00 : f32
    %7 = vector.broadcast %cst_6 : f32 to vector<8x256xf32>
    %8 = arith.maximumf %6, %7 : vector<8x256xf32>
    %c0_7 = arith.constant 0 : index
    %c0_8 = arith.constant 0 : index
    %c0_9 = arith.constant 0 : index
    %9 = vector.load %arg5[%c0_7, %c0_8, %c0_9] : memref<1x8x256xf32, #tpu.memory_space<vmem>>, vector<1x8x256xf32>
    %10 = vector.shape_cast %9 : vector<1x8x256xf32> to vector<8x256xf32>
    %11 = vector.shape_cast %8 : vector<8x256xf32> to vector<1x8x256xf32>
    tpu.vector_store %arg5[%c0_7, %c0_8, %c0_9], %11 {strides = array<i32>} : memref<1x8x256xf32, #tpu.memory_space<vmem>>, vector<1x8x256xf32>,
    return
  }
  func.func @transform_0(%arg0: i32, %arg1: i32) -> (i32, i32, i32) {
    %c0_i32 = arith.constant 0 : i32
    %c0_i32_0 = arith.constant 0 : i32
    return %arg0, %c0_i32, %arg1 : i32, i32, i32
  }
  func.func @transform_1(%arg0: i32, %arg1: i32) -> (i32, i32) {
    %c0_i32 = arith.constant 0 : i32
    %c0_i32_0 = arith.constant 0 : i32
    %c0_i32_1 = arith.constant 0 : i32
    return %c0_i32, %c0_i32_0 : i32, i32
  }
  func.func @transform_2(%arg0: i32, %arg1: i32) -> (i32, i32) {
    %c0_i32 = arith.constant 0 : i32
    %c0_i32_0 = arith.constant 0 : i32
    %c0_i32_1 = arith.constant 0 : i32
    return %c0_i32, %c0_i32_0 : i32, i32
  }
  func.func @transform_3(%arg0: i32, %arg1: i32) -> (i32, i32, i32) {
    %c0_i32 = arith.constant 0 : i32
    %c0_i32_0 = arith.constant 0 : i32
    return %arg0, %c0_i32, %arg1 : i32, i32, i32
  }
}

</mosaic_0001>

<llo_original>
// kernel: tpu_custom_call.1
$region0: #{tpu_custom_call.1}
  #allocation0 [shape = 'u32[]', space=smem, size = 0x4, offset = 0x4, fixed_abs, tag = 'smem constant byte address 0x4 - core index']
  #allocation1 [shape = 'u32[72,128]{1,0:T(1,128)}', space=vmem, size = 0x9000, scoped, tag = 'internal scratch']
  %s0 = inlined_call_operand.vmem [shape: bf16[2,4,256], index: 0, kind: input, shape index: {}]
  %s1 = inlined_call_operand.vmem [shape: bf16[8,4], index: 1, kind: input, shape index: {}]
  %s2 = inlined_call_operand.vmem [shape: f32[8,1], index: 2, kind: input, shape index: {}]
  %s3 = inlined_call_operand.hbm [shape: f32[2,8,256], index: 3, kind: output, shape index: {}]
  %s4 = sld [smem:[#allocation0]]
  $region45: #{tpu_custom_call.1} parent=0
    _
  %s6 = ssub.s32 1, %s4
  %s7 = scalar_select 0, %s6, %s4
  $region1: #{tpu_custom_call.1} parent=0
    #allocation2 [shape = 'u8[16384]{0}', space=vmem, size = 0x4000, scoped, tag = 'output window, operand 0']
    #allocation3 [shape = 's32[2]{0}', space=sflag, size = 0x8, scoped, tag = 'scoped memory for tpu_custom_call.1']
    %8 = vsyncpa [#allocation3], 0
    %s9 = scalar_lea.sflag [#allocation3], 1
    %10 = vsyncpa %s9, 0
    loop: start=0, step=1, limit=4
    $region2: #{tpu_custom_call.1} parent=1 // loop_pre_header
      _
    $region3: #{tpu_custom_call.1} parent=1 // loop_header
      %s12 = sphi 0, %s16
      %p13 = scmp.ge.s32.totalorder %s12, 4
      %s19 = sphi 0, %s31
      %s20 = sphi 0, %s27
      %s21 = sphi 0, %s19
      %s22 = sphi 0, %s20
      %s23 = sphi 0, %s21
      %s24 = sphi 0, %s22
      %s36 = sphi 0, %s38
      %s39 = sphi 0, %s36
      %s40 = sphi 0, %s39
      %s56 = sphi 0, %s40
      %s60 = sphi 0, %s60
      %s62 = sphi 0, %s60
      %s63 = sphi 0, %s62
      %s77 = sphi 0, %s63
      %s81 = sphi 0, %s81
      %s83 = sphi 0, %s81
      %s84 = sphi 0, %s83
      %s98 = sphi 0, %s84
      %s106 = sphi 0, %s108
      %s109 = sphi 0, %s106
      %s110 = sphi 0, %s109
      %s126 = sphi 0, %s110
    $region4: #{tpu_custom_call.1} parent=1 // loop_header_branch
      %15 = sbr.rel (%p13) target = $region8
    $region5: #{tpu_custom_call.1} parent=1 // loop_body
      %s17 = ssub.s32 %s12, 1
      %s18 = ssub.s32 %s12, 2
      %s25 = sadd.s32 1, %s20
      %p26 = scmp.ge.s32.totalorder %s25, 1
      %s27 = scalar_select %p26, 0, %s25
      %s28 = sadd.s32 1, %s19
      %s29 = scalar_select %p26, %s28, %s19
      %p30 = scmp.ge.s32.totalorder %s29, 2
      %s31 = scalar_select %p30, 0, %s29
      %s32 = ssub.s32 %s19, %s31
      %s33 = ssub.s32 %s20, %s27
      %s34 = sor.u32 %s32, %s33
      %p35 = scmp.eq.s32.totalorder %s34, 0
      %s37 = sadd.s32 %s36, 1
      %s38 = scalar_select %p35, %s36, %s37
      %p41 = pneg %p35
      %p42 = scmp.eq.s32.totalorder %s12, 1
      %p43 = por %p41, %p42
      %p44 = scmp.ne.s32.totalorder %s36, %s39
      %p45 = scmp.eq.s32.totalorder %s12, 0
      %p46 = por %p44, %p45
      %p47 = scmp.ne.s32.totalorder %s36, %s39
      %p48 = scmp.eq.s32.totalorder %s17, 1
      %p49 = por %p47, %p48
      %p50 = scmp.ne.s32.totalorder %s39, %s40
      %p51 = scmp.eq.s32.totalorder %s17, 0
      %p52 = por %p50, %p51
      %p53 = scmp.ne.s32.totalorder %s39, %s40
      %p54 = scmp.eq.s32.totalorder %s18, 1
      %p55 = por %p53, %p54
      %p57 = scmp.ne.s32.totalorder %s40, %s56
      %p58 = scmp.eq.s32.totalorder %s18, 0
      %p59 = por %p57, %p58
      %s61 = sadd.s32 %s60, 1
      %p64 = scmp.eq.s32.totalorder %s12, 1
      %p65 = scmp.ne.s32.totalorder %s60, %s62
      %p66 = scmp.eq.s32.totalorder %s12, 0
      %p67 = por %p65, %p66
      %p68 = scmp.ne.s32.totalorder %s60, %s62
      %p69 = scmp.eq.s32.totalorder %s17, 1
      %p70 = por %p68, %p69
      %p71 = scmp.ne.s32.totalorder %s62, %s63
      %p72 = scmp.eq.s32.totalorder %s17, 0
      %p73 = por %p71, %p72
      %p74 = scmp.ne.s32.totalorder %s62, %s63
      %p75 = scmp.eq.s32.totalorder %s18, 1
      %p76 = por %p74, %p75
      %p78 = scmp.ne.s32.totalorder %s63, %s77
      %p79 = scmp.eq.s32.totalorder %s18, 0
      %p80 = por %p78, %p79
      %s82 = sadd.s32 %s81, 1
      %p85 = scmp.eq.s32.totalorder %s12, 1
      %p86 = scmp.ne.s32.totalorder %s81, %s83
      %p87 = scmp.eq.s32.totalorder %s12, 0
      %p88 = por %p86, %p87
      %p89 = scmp.ne.s32.totalorder %s81, %s83
      %p90 = scmp.eq.s32.totalorder %s17, 1
      %p91 = por %p89, %p90
      %p92 = scmp.ne.s32.totalorder %s83, %s84
      %p93 = scmp.eq.s32.totalorder %s17, 0
      %p94 = por %p92, %p93
      %p95 = scmp.ne.s32.totalorder %s83, %s84
      %p96 = scmp.eq.s32.totalorder %s18, 1
      %p97 = por %p95, %p96
      %p99 = scmp.ne.s32.totalorder %s84, %s98
      %p100 = scmp.eq.s32.totalorder %s18, 0
      %p101 = por %p99, %p100
      %s102 = ssub.s32 %s19, %s31
      %s103 = ssub.s32 %s20, %s27
      %s104 = sor.u32 %s102, %s103
      %p105 = scmp.eq.s32.totalorder %s104, 0
      %s107 = sadd.s32 %s106, 1
      %s108 = scalar_select %p105, %s106, %s107
      %p111 = pneg %p105
      %p112 = scmp.eq.s32.totalorder %s12, 1
      %p113 = por %p111, %p112
      %p114 = scmp.ne.s32.totalorder %s106, %s109
      %p115 = scmp.eq.s32.totalorder %s12, 0
      %p116 = por %p114, %p115
      %p117 = scmp.ne.s32.totalorder %s106, %s109
      %p118 = scmp.eq.s32.totalorder %s17, 1
      %p119 = por %p117, %p118
      %p120 = scmp.ne.s32.totalorder %s109, %s110
      %p121 = scmp.eq.s32.totalorder %s17, 0
      %p122 = por %p120, %p121
      %p123 = scmp.ne.s32.totalorder %s109, %s110
      %p124 = scmp.eq.s32.totalorder %s18, 1
      %p125 = por %p123, %p124
      %p127 = scmp.ne.s32.totalorder %s110, %s126
      %p128 = scmp.eq.s32.totalorder %s18, 0
      %p129 = por %p127, %p128
      %p130 = scmp.le.s32.totalorder 1, %s12
      %p131 = scmp.lt.s32.totalorder %s12, 3
      %p132 = pnand %p130, %p131
      %p133 = pneg %p132
      // Predicated region
      $region9: #{tpu_custom_call.1} parent=5 // pred_check
        _
      $region10: #{tpu_custom_call.1} parent=5 // pred_check_branch
        %135 = sbr.rel (%p132) target = $region12
      $region11: #{tpu_custom_call.1} parent=5 // pred_region
        %s136 = ssub.s32 %s12, 1
        // Predicated region
        $region13: #{tpu_custom_call.1} parent=11 // pred_check
          %p137 = pneg %p73
        $region14: #{tpu_custom_call.1} parent=11 // pred_check_branch
          %139 = sbr.rel (%p137) target = $region16
        $region15: #{tpu_custom_call.1} parent=11 // pred_region
          _
        $region16: #{tpu_custom_call.1} parent=11 // pred_fallthru
          _
        // Predicated region
        $region17: #{tpu_custom_call.1} parent=11 // pred_check
          %p140 = pneg %p94
        $region18: #{tpu_custom_call.1} parent=11 // pred_check_branch
          %142 = sbr.rel (%p140) target = $region20
        $region19: #{tpu_custom_call.1} parent=11 // pred_region
          _
        $region20: #{tpu_custom_call.1} parent=11 // pred_fallthru
          _
      $region12: #{tpu_custom_call.1} parent=5 // pred_fallthru
        _
      %p143 = scmp.lt.s32.totalorder %s12, 2
      // Predicated region
      $region21: #{tpu_custom_call.1} parent=5 // pred_check
        %p144 = pneg %p143
      $region22: #{tpu_custom_call.1} parent=5 // pred_check_branch
        %146 = sbr.rel (%p144) target = $region24
      $region23: #{tpu_custom_call.1} parent=5 // pred_region
        // Predicated region
        $region25: #{tpu_custom_call.1} parent=23 // pred_check
          %p147 = pneg %p46
        $region26: #{tpu_custom_call.1} parent=23 // pred_check_branch
          %149 = sbr.rel (%p147) target = $region28
        $region27: #{tpu_custom_call.1} parent=23 // pred_region
          %s150 = smul.u32 2, %s20
          %p151 = scmp.lt.s32.totalorder %s19, 1
          %s152 = scalar_select %p151, %s19, 1
          %p153 = scmp.lt.s32.totalorder %s150, 1
          %s154 = scalar_select %p153, %s150, 1
          %s155 = smul.addr %s152, 2
          %s156 = sadd.s32 %s154, %s155
          %s157 = smul.addr %s156, 2
          %s158 = scalar_lea.vmem %s0, %s157
          %s159 = smul.u32 2, %s20
        $region28: #{tpu_custom_call.1} parent=23 // pred_fallthru
          _
      $region24: #{tpu_custom_call.1} parent=5 // pred_fallthru
        _
      %p160 = scmp.le.s32.totalorder 1, %s12
      %p161 = scmp.lt.s32.totalorder %s12, 3
      %p162 = pnand %p160, %p161
      %p163 = pneg %p162
      // Predicated region
      $region29: #{tpu_custom_call.1} parent=5 // pred_check
        _
      $region30: #{tpu_custom_call.1} parent=5 // pred_check_branch
        %165 = sbr.rel (%p162) target = $region32
      $region31: #{tpu_custom_call.1} parent=5 // pred_region
        %s166 = ssub.s32 %s12, 1
        %s167 = smul.u32 2, %s22
        %p168 = scmp.lt.s32.totalorder %s21, 1
        %s169 = scalar_select %p168, %s21, 1
        %p170 = scmp.lt.s32.totalorder %s167, 1
        %s171 = scalar_select %p170, %s167, 1
        %s172 = smul.addr %s169, 2
        %s173 = sadd.s32 %s171, %s172
        %s174 = smul.addr %s173, 2
        %s175 = scalar_lea.vmem %s0, %s174
        %p176 = pneg %p52
        %p177 = pneg %p49
        %p178 = pneg %p73
        %p179 = pneg %p70
        %p180 = pneg %p94
        %p181 = pneg %p91
        %p182 = pneg %p122
        %p183 = pneg %p119
        %s184 = sand.u32 %s109, 1
        %s185 = scalar_lea.sflag [#allocation3], %s184
        %s186 = sand.u32 %s109, 1
        %s187 = smul.addr %s186, 16
        %s188 = scalar_lea.vmem [#allocation2], %s187
        %s189 = smul.u32 2, %s22
        %p190 = scmp.lt.s32.totalorder %s21, 1
        %s191 = scalar_select %p190, %s21, 1
        %p192 = scmp.lt.s32.totalorder %s189, 1
        %s193 = scalar_select %p192, %s189, 1
        %s194 = smul.addr %s191, 2
        %s195 = sadd.s32 %s193, %s194
        %s196 = smul.addr %s195, 2
        %s197 = scalar_lea.vmem %s0, %s196
        %s198 = smul.u32 2, %s22
        %s199 = smul.u32 2, %s22
        %v201 = vld [vmem:[%s1] sm:$0xf]
        %v202 = vld [vmem:[%s2] sm:$0xff]
        %v203 = vld [vmem:[%s197] sm:$0xf]
        %205 = vset.pattern.permute.xlu0 0
        %206 = vperm.xlu0 %205, %v202
        %v207 = vpop.permute.xlu0 %206
        %210 = vst [vmem:[#allocation1] ss:$4 sm:$0xff] %v203
        %v211 = vld.sshfl [vmem:[#allocation1] sm:$0xff pattern:$0x73625140]
        %v212 = vld.sshfl [vmem:[#allocation1 + $0x8] sm:$0xff pattern:$0x73625140]
        %vm213 = vcmask 31744
        %v215 = vsel %vm213, %v201, 0
        %vm217 = vcmask 1041408
        %v218 = vsel %vm217, %v211, 0
        %v220 = vsel %vm217, %v212, 0
        %222 = vmatpush.bf16.msra.mxu0 0
        %223 = vmatpush.bf16.msra.mxu0 0
        %224 = vmatpush.bf16.msra.mxu0 0
        %225 = vmatpush.bf16.msra.mxu0 0
        %226 = vmatpush.bf16.msra.mxu0 0
        %227 = vmatpush.bf16.msra.mxu0 0
        %228 = vmatpush.bf16.msra.mxu0 0
        %229 = vmatpush.bf16.msra.mxu0 %v218
        %230 = vmatmul.bf16.gmra.mxu0 %v215
        %v231 = vpop.f32.mrf.mxu0
        %v232 = vadd.f32 %v207, %v231
        %v233 = vpop.f32.mrf.mxu0
        %234 = vdwg.mxu0
        %235 = vmatpush.bf16.msra.mxu0 0
        %236 = vmatpush.bf16.msra.mxu0 0
        %237 = vmatpush.bf16.msra.mxu0 0
        %238 = vmatpush.bf16.msra.mxu0 0
        %239 = vmatpush.bf16.msra.mxu0 0
        %240 = vmatpush.bf16.msra.mxu0 0
        %241 = vmatpush.bf16.msra.mxu0 0
        %242 = vmatpush.bf16.msra.mxu0 %v220
        %243 = vmatmul.bf16.gmra.mxu0 %v215
        %v244 = vpop.f32.mrf.mxu0
        %v245 = vadd.f32 %v207, %v244
        %v246 = vpop.f32.mrf.mxu0
        %247 = vdwg.mxu0
        %v248 = vmax.f32 %v232, 0.0
        %v249 = vmax.f32 %v245, 0.0
        %250 = vst [vmem:[%s188] sm:$0xff] %v248
        %251 = vst [vmem:[%s188 + $0x8] sm:$0xff] %v249
        %s252 = sand.u32 %s109, 1
        %s253 = scalar_lea.sflag [#allocation3], %s252
        %s254 = sand.u32 %s109, 1
        %s255 = smul.addr %s254, 16
        %s256 = scalar_lea.vmem [#allocation2], %s255
        // Predicated region
        $region33: #{tpu_custom_call.1} parent=31 // pred_check
          %p257 = pneg %p119
        $region34: #{tpu_custom_call.1} parent=31 // pred_check_branch
          %259 = sbr.rel (%p257) target = $region36
        $region35: #{tpu_custom_call.1} parent=31 // pred_region
          %s260 = smul.u32 2, %s22
          %262 = vsyncadd %s253, 0
          %s263 = smul.addr %s21, 2
          %s264 = sadd.s32 %s260, %s263
          %s265 = smul.addr %s264, 8
          %s266 = scalar_lea.hbm %s3, %s265
          %s268 = sshll.u32 %s256, 4
          %s269 = int_to_ptr.vmem [resolvable:$true] %s268
          %s270 = sshll.u32 %s266, 4
          %s271 = int_to_ptr.hbm [resolvable:$true] %s270
          %273 = dma.vmem_to_hbm [thread:$0]  %s269, 256, %s271, %s253
        $region36: #{tpu_custom_call.1} parent=31 // pred_fallthru
          _
      $region32: #{tpu_custom_call.1} parent=5 // pred_fallthru
        _
      %p274 = scmp.le.s32.totalorder 2, %s12
      // Predicated region
      $region37: #{tpu_custom_call.1} parent=5 // pred_check
        %p275 = pneg %p274
      $region38: #{tpu_custom_call.1} parent=5 // pred_check_branch
        %277 = sbr.rel (%p275) target = $region40
      $region39: #{tpu_custom_call.1} parent=5 // pred_region
        %s278 = ssub.s32 %s12, 2
        // Predicated region
        $region41: #{tpu_custom_call.1} parent=39 // pred_check
          %p279 = pneg %p125
        $region42: #{tpu_custom_call.1} parent=39 // pred_check_branch
          %281 = sbr.rel (%p279) target = $region44
        $region43: #{tpu_custom_call.1} parent=39 // pred_region
          %s282 = sand.u32 %s110, 1
          %s283 = scalar_lea.sflag [#allocation3], %s282
          %s284 = sand.u32 %s110, 1
          %s285 = smul.addr %s284, 16
          %s286 = scalar_lea.vmem [#allocation2], %s285
          %288 = dma.done %s283, 256
        $region44: #{tpu_custom_call.1} parent=39 // pred_fallthru
          _
      $region40: #{tpu_custom_call.1} parent=5 // pred_fallthru
        _
    $region6: #{tpu_custom_call.1} parent=1 // loop_footer
      %s16 = sadd.s32 1, %s12
    $region7: #{tpu_custom_call.1} parent=1 // loop_footer_branch
      %11 = sbr.rel target = $region3
    $region8: #{tpu_custom_call.1} parent=1 // loop_exit
      _
    %289 = vsyncpa [#allocation3], 1
    %s290 = scalar_lea.sflag [#allocation3], 1
    %291 = vsyncpa %s290, 1

</llo_original>
